<compile_context>
chip_gen: v6e
topology: v6e:2x2x1
jax: 0.10.0
libtpu: 0.0.40
codegen_flags: <defaults>
</compile_context>

<pallas_src>
import jax
import jax.numpy as jnp
from jax.experimental import pallas as pl
from jax.experimental.pallas import tpu as pltpu

N_INPUTS = 8
N_HIDDEN = 512
N_OUTPUTS = 4
N_PAD = 128          # lane-dense padded output width for linear2 / softmax
TILE_B_MAX = 512     # batch rows per grid step (VMEM use ~1-2 MiB, fine on v5e/v6e/v7x)
NEG_INF = -1e30      # baked into padded b2 lanes so padded logits contribute exp -> 0


def policy_net_kernel(x_ref, w1_ref, b1_ref, w2_ref, b2_ref, o_ref):
    # x:  [TILE_B, 8] f32      w1: [8, 512] bf16        b1: [1, 512] f32
    # w2: [512, 128] bf16 (cols 4..127 zero)             b2: [1, 128] f32 (-1e30 in padded lanes)
    # o:  [TILE_B, 128] f32 (softmax probs; padded lanes are exactly 0)

    # linear1 (bf16 MXU operands, f32 accumulation)
    x = x_ref[...].astype(jnp.bfloat16)
    h = jnp.dot(x, w1_ref[...], preferred_element_type=jnp.float32) + b1_ref[...]

    # TODO(synk): nn.Dropout(p=0.6) in train mode is stochastic; implemented as
    # identity (eval-mode semantics). For train parity use pltpu.prng_seed +
    # pltpu.prng_random_bits with 1/(1-p) inverted scaling.

    # ReLU, then cast to bf16 for the second MXU pass.
    h = jnp.maximum(h, 0.0).astype(jnp.bfloat16)

    # linear2: standard [K, N] matmul with lane-dense padded N=128.
    logits = jnp.dot(h, w2_ref[...], preferred_element_type=jnp.float32) + b2_ref[...]

    # Numerically stable softmax over the feature axis. Padded lanes carry
    # logits ~ -1e30 -> exp underflows to exactly 0, so the denominator only
    # sees the 4 real classes. Exact divide (denominator is tiny; EUP/VPU slack).
    m = jnp.max(logits, axis=-1, keepdims=True)
    e = jnp.exp(logits - m)
    denom = jnp.sum(e, axis=-1, keepdims=True)
    o_ref[...] = (e / denom).astype(o_ref.dtype)


def policy_net_forward(x, w1, b1, w2_pad, b2_pad):
    B = x.shape[0]
    # Single full-batch tile for B <= 512 (block == full dim is always legal),
    # otherwise 512-row tiles; the ragged last block is handled by Pallas
    # (OOB output rows are dropped), so no wrapper pad / slice over the batch.
    tile_b = B if B <= TILE_B_MAX else TILE_B_MAX
    n_tiles = pl.cdiv(B, tile_b)

    out = pl.pallas_call(
        policy_net_kernel,
        out_shape=jax.ShapeDtypeStruct((B, N_PAD), jnp.float32),
        grid=(n_tiles,),
        in_specs=[
            # Only x advances with the grid index.
            pl.BlockSpec((tile_b, N_INPUTS), lambda i: (i, 0)),
            # Weights/biases: constant block index -> DMA'd once, stay resident.
            pl.BlockSpec((N_INPUTS, N_HIDDEN), lambda i: (0, 0)),
            pl.BlockSpec((1, N_HIDDEN), lambda i: (0, 0)),
            pl.BlockSpec((N_HIDDEN, N_PAD), lambda i: (0, 0)),
            pl.BlockSpec((1, N_PAD), lambda i: (0, 0)),
        ],
        out_specs=pl.BlockSpec((tile_b, N_PAD), lambda i: (i, 0)),
        compiler_params=pltpu.CompilerParams(
            # Batch tiles are independent -> shard across TCs on v7x megacore.
            dimension_semantics=("parallel",)
        ),
    )(x, w1, b1, w2_pad, b2_pad)

    # Lane-dense [B, 128] store in-kernel; keep only the 4 real classes here.
    # TODO(synk): for multi-million-row rollouts, slice lanes 0..3 in-kernel
    # instead to avoid the 32x HBM writeback inflation.
    return out[:, :N_OUTPUTS]


def init_params(key):
    """PyTorch-Linear-style init: U(-1/sqrt(fan_in), 1/sqrt(fan_in)).

    Returns (w1, b1, w2_pad, b2_pad, w2, b2): kernel params (bf16 weights,
    padded linear2) plus the unpadded f-layout linear2 for the reference.
    """
    k1, k2, k3, k4 = jax.random.split(key, 4)
    bound1 = 1.0 / (N_INPUTS ** 0.5)
    bound2 = 1.0 / (N_HIDDEN ** 0.5)
    # w1 stored [in, out]; w2 stored [in, out] = [512, 4] then zero-padded to [512, 128].
    w1 = jax.random.uniform(k1, (N_INPUTS, N_HIDDEN), jnp.float32, -bound1, bound1)
    b1 = jax.random.uniform(k2, (1, N_HIDDEN), jnp.float32, -bound1, bound1)
    w2 = jax.random.uniform(k3, (N_HIDDEN, N_OUTPUTS), jnp.float32, -bound2, bound2)
    b2 = jax.random.uniform(k4, (1, N_OUTPUTS), jnp.float32, -bound2, bound2)

    w1_bf16 = w1.astype(jnp.bfloat16)
    w2_bf16 = w2.astype(jnp.bfloat16)
    w2_pad = jnp.pad(w2_bf16, ((0, 0), (0, N_PAD - N_OUTPUTS)))
    b2_pad = jnp.concatenate(
        [b2, jnp.full((1, N_PAD - N_OUTPUTS), NEG_INF, jnp.float32)], axis=1
    )
    return w1_bf16, b1, w2_pad, b2_pad, w2_bf16, b2


def reference_forward(x, w1_bf16, b1, w2_bf16, b2):
    """Pure-JAX reference using the same dtype strategy (bf16 MXU operands,
    f32 accumulation) and the *unpadded* linear2 + plain 4-way softmax, so it
    also validates the padded-N softmax trick."""
    h = jnp.dot(x.astype(jnp.bfloat16), w1_bf16, preferred_element_type=jnp.float32) + b1
    h = jnp.maximum(h, 0.0)
    logits = jnp.dot(h.astype(jnp.bfloat16), w2_bf16,
                     preferred_element_type=jnp.float32) + b2
    return jax.nn.softmax(logits, axis=1)


if __name__ == "__main__":
    key = jax.random.PRNGKey(0)
    kx, kp = jax.random.split(key)

    batch = 64  # small test batch; production rollouts should batch thousands of rows
    x = jax.random.normal(kx, (batch, N_INPUTS), dtype=jnp.float32)
    w1, b1, w2_pad, b2_pad, w2, b2 = init_params(kp)

    out = policy_net_forward(x, w1, b1, w2_pad, b2_pad)
    out = jax.block_until_ready(out)

    ref = reference_forward(x, w1, b1, w2, b2)
    assert out.shape == (batch, N_OUTPUTS)
    assert jnp.allclose(out, ref, atol=1e-4, rtol=1e-4), "mismatch vs JAX reference"
    # Exact softmax normalization -> rows sum to 1 up to f32 rounding.
    assert jnp.allclose(jnp.sum(out, axis=1), 1.0, atol=1e-5)

    print("KERNEL_OK")
</pallas_src>

<mosaic_0001>
module attributes {stable_mosaic.version = 11 : i64} {
  func.func @policy_net_kernel(%arg0: i32, %arg1: memref<64x8xf32, #tpu.memory_space<vmem>>, %arg2: memref<8x512xbf16, #tpu.memory_space<vmem>>, %arg3: memref<1x512xf32, #tpu.memory_space<vmem>>, %arg4: memref<512x128xbf16, #tpu.memory_space<vmem>>, %arg5: memref<1x128xf32, #tpu.memory_space<vmem>>, %arg6: memref<64x128xf32, #tpu.memory_space<vmem>>) attributes {dimension_semantics = [#tpu.dimension_semantics<parallel>], iteration_bounds = array<i64: 1>, scalar_prefetch = 0 : i64, scratch_operands = 0 : i64, tpu.core_type = #tpu.core_type<tc>, window_params = [{transform_indices = @transform_0, window_bounds = array<i64: 64, 8>}, {pipeline_mode = #tpu.pipeline_mode<synchronous>, transform_indices = @transform_1, window_bounds = array<i64: 8, 512>}, {pipeline_mode = #tpu.pipeline_mode<synchronous>, transform_indices = @transform_2, window_bounds = array<i64: 1, 512>}, {pipeline_mode = #tpu.pipeline_mode<synchronous>, transform_indices = @transform_3, window_bounds = array<i64: 512, 128>}, {pipeline_mode = #tpu.pipeline_mode<synchronous>, transform_indices = @transform_4, window_bounds = array<i64: 1, 128>}, {transform_indices = @transform_5, window_bounds = array<i64: 64, 128>}]} {
    %c0 = arith.constant 0 : index
    %c0_0 = arith.constant 0 : index
    %0 = vector.load %arg1[%c0, %c0_0] : memref<64x8xf32, #tpu.memory_space<vmem>>, vector<64x8xf32>
    %1 = arith.truncf %0 : vector<64x8xf32> to vector<64x8xbf16>
    %c0_1 = arith.constant 0 : index
    %c0_2 = arith.constant 0 : index
    %2 = vector.load %arg2[%c0_1, %c0_2] : memref<8x512xbf16, #tpu.memory_space<vmem>>, vector<8x512xbf16>
    %cst = arith.constant dense<0.000000e+00> : vector<64x512xf32>
    %3 = tpu.matmul %1, %2, %cst {dimension_numbers = #tpu.dot_dimension_numbers<[1], [0], [0], [1], [0, 0, 1, 1], [], []>} : vector<64x8xbf16>, vector<8x512xbf16>, vector<64x512xf32> -> vector<64x512xf32>
    %c0_3 = arith.constant 0 : index
    %c0_4 = arith.constant 0 : index
    %4 = vector.load %arg3[%c0_3, %c0_4] : memref<1x512xf32, #tpu.memory_space<vmem>>, vector<1x512xf32>
    %5 = vector.broadcast %4 : vector<1x512xf32> to vector<64x512xf32>
    %6 = arith.addf %3, %5 : vector<64x512xf32>
    %cst_5 = arith.constant 0.000000e+00 : f32
    %7 = vector.broadcast %cst_5 : f32 to vector<64x512xf32>
    %8 = arith.maximumf %6, %7 : vector<64x512xf32>
    %9 = arith.truncf %8 : vector<64x512xf32> to vector<64x512xbf16>
    %c0_6 = arith.constant 0 : index
    %c0_7 = arith.constant 0 : index
    %10 = vector.load %arg4[%c0_6, %c0_7] : memref<512x128xbf16, #tpu.memory_space<vmem>>, vector<512x128xbf16>
    %cst_8 = arith.constant dense<0.000000e+00> : vector<64x128xf32>
    %11 = tpu.matmul %9, %10, %cst_8 {dimension_numbers = #tpu.dot_dimension_numbers<[1], [0], [0], [1], [0, 0, 1, 1], [], []>} : vector<64x512xbf16>, vector<512x128xbf16>, vector<64x128xf32> -> vector<64x128xf32>
    %c0_9 = arith.constant 0 : index
    %c0_10 = arith.constant 0 : index
    %12 = vector.load %arg5[%c0_9, %c0_10] : memref<1x128xf32, #tpu.memory_space<vmem>>, vector<1x128xf32>
    %13 = vector.broadcast %12 : vector<1x128xf32> to vector<64x128xf32>
    %14 = arith.addf %11, %13 : vector<64x128xf32>
    %cst_11 = arith.constant dense<0xFF800000> : vector<64xf32>
    %15 = vector.multi_reduction <maximumf>, %14, %cst_11 [1] : vector<64x128xf32> to vector<64xf32>
    %16 = vector.shape_cast %15 : vector<64xf32> to vector<64x1xf32>
    %17 = vector.broadcast %16 : vector<64x1xf32> to vector<64x128xf32>
    %18 = arith.subf %14, %17 : vector<64x128xf32>
    %19 = math.exp %18 : vector<64x128xf32>
    %cst_12 = arith.constant dense<0.000000e+00> : vector<64xf32>
    %20 = vector.multi_reduction <add>, %19, %cst_12 [1] : vector<64x128xf32> to vector<64xf32>
    %21 = vector.shape_cast %20 : vector<64xf32> to vector<64x1xf32>
    %22 = vector.broadcast %21 : vector<64x1xf32> to vector<64x128xf32>
    %23 = arith.divf %19, %22 : vector<64x128xf32>
    %c0_13 = arith.constant 0 : index
    %c0_14 = arith.constant 0 : index
    %24 = vector.load %arg6[%c0_13, %c0_14] : memref<64x128xf32, #tpu.memory_space<vmem>>, vector<64x128xf32>
    tpu.vector_store %arg6[%c0_13, %c0_14], %23 {strides = array<i32>} : memref<64x128xf32, #tpu.memory_space<vmem>>, vector<64x128xf32>,
    return
  }
  func.func @transform_0(%arg0: i32) -> (i32, i32) {
    %c0_i32 = arith.constant 0 : i32
    %c0_i32_0 = arith.constant 0 : i32
    return %arg0, %c0_i32 : i32, i32
  }
  func.func @transform_1(%arg0: i32) -> (i32, i32) {
    %c0_i32 = arith.constant 0 : i32
    %c0_i32_0 = arith.constant 0 : i32
    %c0_i32_1 = arith.constant 0 : i32
    return %c0_i32, %c0_i32_0 : i32, i32
  }
  func.func @transform_2(%arg0: i32) -> (i32, i32) {
    %c0_i32 = arith.constant 0 : i32
    %c0_i32_0 = arith.constant 0 : i32
    %c0_i32_1 = arith.constant 0 : i32
    return %c0_i32, %c0_i32_0 : i32, i32
  }
  func.func @transform_3(%arg0: i32) -> (i32, i32) {
    %c0_i32 = arith.constant 0 : i32
    %c0_i32_0 = arith.constant 0 : i32
    %c0_i32_1 = arith.constant 0 : i32
    return %c0_i32, %c0_i32_0 : i32, i32
  }
  func.func @transform_4(%arg0: i32) -> (i32, i32) {
    %c0_i32 = arith.constant 0 : i32
    %c0_i32_0 = arith.constant 0 : i32
    %c0_i32_1 = arith.constant 0 : i32
    return %c0_i32, %c0_i32_0 : i32, i32
  }
  func.func @transform_5(%arg0: i32) -> (i32, i32) {
    %c0_i32 = arith.constant 0 : i32
    %c0_i32_0 = arith.constant 0 : i32
    return %arg0, %c0_i32 : i32, i32
  }
}

</mosaic_0001>

<llo_original>
// kernel: tpu_custom_call.1
$region0: #{tpu_custom_call.1}
  #allocation0 [shape = 'u32[]', space=smem, size = 0x4, offset = 0x4, fixed_abs, tag = 'smem constant byte address 0x4 - core index']
  #allocation1 [shape = 'u32[144,128]{1,0:T(1,128)}', space=vmem, size = 0x12000, scoped, tag = 'internal scratch']
  %s0 = inlined_call_operand.vmem [shape: f32[64,8], index: 0, kind: input, shape index: {}]
  %s1 = inlined_call_operand.vmem [shape: bf16[8,512], index: 1, kind: input, shape index: {}]
  %s2 = inlined_call_operand.vmem [shape: f32[1,512], index: 2, kind: input, shape index: {}]
  %s3 = inlined_call_operand.hbm [shape: bf16[512,128], index: 3, kind: input, shape index: {}]
  %s4 = inlined_call_operand.vmem [shape: f32[1,128], index: 4, kind: input, shape index: {}]
  %s5 = inlined_call_operand.hbm [shape: f32[64,128], index: 5, kind: output, shape index: {}]
  %s6 = sld [smem:[#allocation0]]
  $region34: #{tpu_custom_call.1} parent=0
    _
  %s8 = ssub.s32 1, %s6
  %s9 = scalar_select 0, %s8, %s6
  $region1: #{tpu_custom_call.1} parent=0
    #allocation2 [shape = 'u8[131072]{0}', space=vmem, size = 0x20000, scoped, tag = 'input window, operand 3, single buffered']
    #allocation3 [shape = 's32[1]{0}', space=sflag, size = 0x4, scoped, tag = 'scoped memory for tpu_custom_call.1']
    #allocation4 [shape = 's32[1]{0}', space=sflag, size = 0x4, scoped, tag = 'scoped memory for tpu_custom_call.1']
    #allocation5 [shape = 'u8[32768]{0}', space=vmem, size = 0x8000, scoped, tag = 'output window, operand 0, single buffered']
    %10 = vsyncpa [#allocation3], 0
    %11 = vsyncpa [#allocation4], 0
    // Predicated region
    $region2: #{tpu_custom_call.1} parent=1 // pred_check
      _
    $region3: #{tpu_custom_call.1} parent=1 // pred_check_branch
      %13 = sbr.rel (0) target = $region5
    $region4: #{tpu_custom_call.1} parent=1 // pred_region
      _
    $region5: #{tpu_custom_call.1} parent=1 // pred_fallthru
      _
    // Predicated region
    $region6: #{tpu_custom_call.1} parent=1 // pred_check
      _
    $region7: #{tpu_custom_call.1} parent=1 // pred_check_branch
      %15 = sbr.rel (0) target = $region9
    $region8: #{tpu_custom_call.1} parent=1 // pred_region
      _
    $region9: #{tpu_custom_call.1} parent=1 // pred_fallthru
      _
    // Predicated region
    $region10: #{tpu_custom_call.1} parent=1 // pred_check
      _
    $region11: #{tpu_custom_call.1} parent=1 // pred_check_branch
      %17 = sbr.rel (0) target = $region13
    $region12: #{tpu_custom_call.1} parent=1 // pred_region
      _
    $region13: #{tpu_custom_call.1} parent=1 // pred_fallthru
      _
    // Predicated region
    $region14: #{tpu_custom_call.1} parent=1 // pred_check
      _
    $region15: #{tpu_custom_call.1} parent=1 // pred_check_branch
      %19 = sbr.rel (0) target = $region17
    $region16: #{tpu_custom_call.1} parent=1 // pred_region
      %s21 = ssub.s32 4096, 4096
      %22 = vsyncadd [#allocation3], %s21
      %s23 = sshll.u32 [#allocation2], 4
      %s24 = int_to_ptr.vmem [resolvable:$true] %s23
      %29 = dma.hbm_to_vmem [thread:$0]  %s3, 4096, %s24, [#allocation3], 64, 64, 4
    $region17: #{tpu_custom_call.1} parent=1 // pred_fallthru
      _
    // Predicated region
    $region18: #{tpu_custom_call.1} parent=1 // pred_check
      _
    $region19: #{tpu_custom_call.1} parent=1 // pred_check_branch
      %31 = sbr.rel (0) target = $region21
    $region20: #{tpu_custom_call.1} parent=1 // pred_region
      _
    $region21: #{tpu_custom_call.1} parent=1 // pred_fallthru
      _
    // Predicated region
    $region22: #{tpu_custom_call.1} parent=1 // pred_check
      _
    $region23: #{tpu_custom_call.1} parent=1 // pred_check_branch
      %33 = sbr.rel (0) target = $region25
    $region24: #{tpu_custom_call.1} parent=1 // pred_region
      %34 = dma.done [#allocation3], 4096
    $region25: #{tpu_custom_call.1} parent=1 // pred_fallthru
      _
    %v36 = vld [vmem:[%s0] sm:$0xff]
    %v37 = vld [vmem:[%s0 + $0x8] sm:$0xff]
    %v38 = vld [vmem:[%s0 + $0x10] sm:$0xff]
    %v39 = vld [vmem:[%s0 + $0x18] sm:$0xff]
    %v40 = vld [vmem:[%s0 + $0x20] sm:$0xff]
    %v41 = vld [vmem:[%s0 + $0x28] sm:$0xff]
    %v42 = vld [vmem:[%s0 + $0x30] sm:$0xff]
    %v43 = vld [vmem:[%s0 + $0x38] sm:$0xff]
    %v44 = vpack.c.bf16 %v37, %v36
    %v45 = vpack.c.bf16 %v39, %v38
    %v46 = vpack.c.bf16 %v41, %v40
    %v47 = vpack.c.bf16 %v43, %v42
    %v48 = vld [vmem:[%s1] sm:$0xff]
    %v49 = vld [vmem:[%s1 + $0x8] sm:$0xff]
    %v50 = vld [vmem:[%s2] sm:$0xf]
    %v52 = vlaneseq
    %v53 = vshrl.u32 %v52, 7
    %v54 = vsub.s32 0, %v53
    %v55 = vrot.slane %v50, %v54
    %v56 = vlaneseq
    %v57 = vshrl.u32 %v56, 7
    %v58 = vsub.s32 1, %v57
    %v59 = vrot.slane %v50, %v58
    %v60 = vlaneseq
    %v61 = vshrl.u32 %v60, 7
    %v62 = vsub.s32 2, %v61
    %v63 = vrot.slane %v50, %v62
    %v64 = vlaneseq
    %v65 = vshrl.u32 %v64, 7
    %v66 = vsub.s32 3, %v65
    %v67 = vrot.slane %v50, %v66
    %v74 = vunpack.c.l.b16 %v48
    %v75 = vunpack.c.h.b16 %v48
    %v76 = vunpack.c.l.b16 %v49
    %v77 = vunpack.c.h.b16 %v49
    %v78 = vpack.c.b16 %v74, %v74
    %v79 = vpack.c.b16 %v75, %v75
    %v80 = vpack.c.b16 %v76, %v76
    %v81 = vpack.c.b16 %v77, %v77
    %vm82 = vcmask 64512
    %v84 = vsel %vm82, %v44, 0
    %v87 = vsel %vm82, %v45, 0
    %v90 = vsel %vm82, %v46, 0
    %v93 = vsel %vm82, %v47, 0
    %vm95 = vcmask 1043456
    %v97 = vsel %vm95, %v78, 0
    %v100 = vsel %vm95, %v79, 0
    %v103 = vsel %vm95, %v80, 0
    %v106 = vsel %vm95, %v81, 0
    %108 = vmatprep.subr.bf16.mxu0 0
    %109 = vmatpush1.bf16.msra.mxu0 0
    %110 = vmatprep.subr.bf16.mxu0 0
    %111 = vmatpush1.bf16.msra.mxu0 0
    %112 = vmatprep.subr.bf16.mxu0 0
    %113 = vmatpush1.bf16.msra.mxu0 0
    %114 = vmatprep.subr.bf16.mxu0 0
    %115 = vmatpush1.bf16.msra.mxu0 0
    %116 = vmatprep.subr.bf16.mxu0 0
    %117 = vmatpush1.bf16.msra.mxu0 0
    %118 = vmatprep.subr.bf16.mxu0 0
    %119 = vmatpush1.bf16.msra.mxu0 0
    %120 = vmatprep.subr.bf16.mxu0 0
    %121 = vmatpush1.bf16.msra.mxu0 0
    %122 = vmatprep.subr.bf16.mxu0 %v100
    %123 = vmatpush1.bf16.msra.mxu0 %v97
    %124 = vmatprep.subr.bf16.mxu0 0
    %125 = vmatpush2.bf16.msra.mxu0 0
    %126 = vmatprep.subr.bf16.mxu0 0
    %127 = vmatpush2.bf16.msra.mxu0 0
    %128 = vmatprep.subr.bf16.mxu0 0
    %129 = vmatpush2.bf16.msra.mxu0 0
    %130 = vmatprep.subr.bf16.mxu0 0
    %131 = vmatpush2.bf16.msra.mxu0 0
    %132 = vmatprep.subr.bf16.mxu0 0
    %133 = vmatpush2.bf16.msra.mxu0 0
    %134 = vmatprep.subr.bf16.mxu0 0
    %135 = vmatpush2.bf16.msra.mxu0 0
    %136 = vmatprep.subr.bf16.mxu0 0
    %137 = vmatpush2.bf16.msra.mxu0 0
    %138 = vmatprep.subr.bf16.mxu0 0
    %139 = vmatpush2.bf16.msra.mxu0 0
    %140 = vmatprep.mubr.bf16.mxu0 0
    %141 = vmatmul.mubr.bf16.gmra.mxu0 %v84
    %v142 = vpop.f32.mrf.mxu0
    %v143 = vadd.f32 %v55, %v142
    %v144 = vpop.f32.mrf.mxu0
    %v145 = vadd.f32 %v59, %v144
    %v146 = vpop.f32.mrf.mxu0
    %v147 = vadd.f32 %v55, %v146
    %v148 = vpop.f32.mrf.mxu0
    %v149 = vadd.f32 %v59, %v148
    %150 = vmatprep.mubr.bf16.mxu0 0
    %151 = vmatmul.mubr.bf16.gmra.mxu0 %v87
    %v152 = vpop.f32.mrf.mxu0
    %v153 = vadd.f32 %v55, %v152
    %v154 = vpop.f32.mrf.mxu0
    %v155 = vadd.f32 %v59, %v154
    %v156 = vpop.f32.mrf.mxu0
    %v157 = vadd.f32 %v55, %v156
    %v158 = vpop.f32.mrf.mxu0
    %v159 = vadd.f32 %v59, %v158
    %160 = vmatprep.mubr.bf16.mxu0 0
    %161 = vmatmul.mubr.bf16.gmra.mxu0 %v90
    %v162 = vpop.f32.mrf.mxu0
    %v163 = vadd.f32 %v55, %v162
    %v164 = vpop.f32.mrf.mxu0
    %v165 = vadd.f32 %v59, %v164
    %v166 = vpop.f32.mrf.mxu0
    %v167 = vadd.f32 %v55, %v166
    %v168 = vpop.f32.mrf.mxu0
    %v169 = vadd.f32 %v59, %v168
    %170 = vmatprep.mubr.bf16.mxu0 0
    %171 = vmatmul.mubr.bf16.gmra.mxu0 %v93
    %v172 = vpop.f32.mrf.mxu0
    %v173 = vadd.f32 %v55, %v172
    %v174 = vpop.f32.mrf.mxu0
    %v175 = vadd.f32 %v59, %v174
    %v176 = vpop.f32.mrf.mxu0
    %v177 = vadd.f32 %v55, %v176
    %v178 = vpop.f32.mrf.mxu0
    %v179 = vadd.f32 %v59, %v178
    %180 = vdwg.mxu0
    %181 = vmatprep.subr.bf16.mxu0 0
    %182 = vmatpush1.bf16.msra.mxu0 0
    %183 = vmatprep.subr.bf16.mxu0 0
    %184 = vmatpush1.bf16.msra.mxu0 0
    %185 = vmatprep.subr.bf16.mxu0 0
    %186 = vmatpush1.bf16.msra.mxu0 0
    %187 = vmatprep.subr.bf16.mxu0 0
    %188 = vmatpush1.bf16.msra.mxu0 0
    %189 = vmatprep.subr.bf16.mxu0 0
    %190 = vmatpush1.bf16.msra.mxu0 0
    %191 = vmatprep.subr.bf16.mxu0 0
    %192 = vmatpush1.bf16.msra.mxu0 0
    %193 = vmatprep.subr.bf16.mxu0 0
    %194 = vmatpush1.bf16.msra.mxu0 0
    %195 = vmatprep.subr.bf16.mxu0 %v106
    %196 = vmatpush1.bf16.msra.mxu0 %v103
    %197 = vmatprep.subr.bf16.mxu0 0
    %198 = vmatpush2.bf16.msra.mxu0 0
    %199 = vmatprep.subr.bf16.mxu0 0
    %200 = vmatpush2.bf16.msra.mxu0 0
    %201 = vmatprep.subr.bf16.mxu0 0
    %202 = vmatpush2.bf16.msra.mxu0 0
    %203 = vmatprep.subr.bf16.mxu0 0
    %204 = vmatpush2.bf16.msra.mxu0 0
    %205 = vmatprep.subr.bf16.mxu0 0
    %206 = vmatpush2.bf16.msra.mxu0 0
    %207 = vmatprep.subr.bf16.mxu0 0
    %208 = vmatpush2.bf16.msra.mxu0 0
    %209 = vmatprep.subr.bf16.mxu0 0
    %210 = vmatpush2.bf16.msra.mxu0 0
    %211 = vmatprep.subr.bf16.mxu0 0
    %212 = vmatpush2.bf16.msra.mxu0 0
    %213 = vmatprep.mubr.bf16.mxu0 0
    %214 = vmatmul.mubr.bf16.gmra.mxu0 %v84
    %v215 = vpop.f32.mrf.mxu0
    %v216 = vadd.f32 %v63, %v215
    %v217 = vpop.f32.mrf.mxu0
    %v218 = vadd.f32 %v67, %v217
    %v219 = vpop.f32.mrf.mxu0
    %v220 = vadd.f32 %v63, %v219
    %v221 = vpop.f32.mrf.mxu0
    %v222 = vadd.f32 %v67, %v221
    %223 = vmatprep.mubr.bf16.mxu0 0
    %224 = vmatmul.mubr.bf16.gmra.mxu0 %v87
    %v225 = vpop.f32.mrf.mxu0
    %v226 = vadd.f32 %v63, %v225
    %v227 = vpop.f32.mrf.mxu0
    %v228 = vadd.f32 %v67, %v227
    %v229 = vpop.f32.mrf.mxu0
    %v230 = vadd.f32 %v63, %v229
    %v231 = vpop.f32.mrf.mxu0
    %v232 = vadd.f32 %v67, %v231
    %233 = vmatprep.mubr.bf16.mxu0 0
    %234 = vmatmul.mubr.bf16.gmra.mxu0 %v90
    %v235 = vpop.f32.mrf.mxu0
    %v236 = vadd.f32 %v63, %v235
    %v237 = vpop.f32.mrf.mxu0
    %v238 = vadd.f32 %v67, %v237
    %v239 = vpop.f32.mrf.mxu0
    %v240 = vadd.f32 %v63, %v239
    %v241 = vpop.f32.mrf.mxu0
    %v242 = vadd.f32 %v67, %v241
    %243 = vmatprep.mubr.bf16.mxu0 0
    %244 = vmatmul.mubr.bf16.gmra.mxu0 %v93
    %v245 = vpop.f32.mrf.mxu0
    %v246 = vadd.f32 %v63, %v245
    %v247 = vpop.f32.mrf.mxu0
    %v248 = vadd.f32 %v67, %v247
    %v249 = vpop.f32.mrf.mxu0
    %v250 = vadd.f32 %v63, %v249
    %v251 = vpop.f32.mrf.mxu0
    %v252 = vadd.f32 %v67, %v251
    %253 = vdwg.mxu0
    %v254 = vmax.f32 %v143, 0.0
    %v255 = vmax.f32 %v145, 0.0
    %v256 = vmax.f32 %v216, 0.0
    %v257 = vmax.f32 %v218, 0.0
    %v258 = vmax.f32 %v147, 0.0
    %v259 = vmax.f32 %v149, 0.0
    %v260 = vmax.f32 %v220, 0.0
    %v261 = vmax.f32 %v222, 0.0
    %v262 = vmax.f32 %v153, 0.0
    %v263 = vmax.f32 %v155, 0.0
    %v264 = vmax.f32 %v226, 0.0
    %v265 = vmax.f32 %v228, 0.0
    %v266 = vmax.f32 %v157, 0.0
    %v267 = vmax.f32 %v159, 0.0
    %v268 = vmax.f32 %v230, 0.0
    %v269 = vmax.f32 %v232, 0.0
    %v270 = vmax.f32 %v163, 0.0
    %v271 = vmax.f32 %v165, 0.0
    %v272 = vmax.f32 %v236, 0.0
    %v273 = vmax.f32 %v238, 0.0
    %v274 = vmax.f32 %v167, 0.0
    %v275 = vmax.f32 %v169, 0.0
    %v276 = vmax.f32 %v240, 0.0
    %v277 = vmax.f32 %v242, 0.0
    %v278 = vmax.f32 %v173, 0.0
    %v279 = vmax.f32 %v175, 0.0
    %v280 = vmax.f32 %v246, 0.0
    %v281 = vmax.f32 %v248, 0.0
    %v282 = vmax.f32 %v177, 0.0
    %v283 = vmax.f32 %v179, 0.0
    %v284 = vmax.f32 %v250, 0.0
    %v285 = vmax.f32 %v252, 0.0
    %v286 = vpack.c.bf16 %v258, %v254
    %v287 = vpack.c.bf16 %v259, %v255
    %v288 = vpack.c.bf16 %v260, %v256
    %v289 = vpack.c.bf16 %v261, %v257
    %v290 = vpack.c.bf16 %v266, %v262
    %v291 = vpack.c.bf16 %v267, %v263
    %v292 = vpack.c.bf16 %v268, %v264
    %v293 = vpack.c.bf16 %v269, %v265
    %v294 = vpack.c.bf16 %v274, %v270
    %v295 = vpack.c.bf16 %v275, %v271
    %v296 = vpack.c.bf16 %v276, %v272
    %v297 = vpack.c.bf16 %v277, %v273
    %v298 = vpack.c.bf16 %v282, %v278
    %v299 = vpack.c.bf16 %v283, %v279
    %v300 = vpack.c.bf16 %v284, %v280
    %v301 = vpack.c.bf16 %v285, %v281
    %v302 = vld [vmem:[#allocation2] sm:$0xf]
    %v303 = vld [vmem:[#allocation2 + $0x4] sm:$0xf]
    %v304 = vld [vmem:[#allocation2 + $0x8] sm:$0xf]
    %v305 = vld [vmem:[#allocation2 + $0xc] sm:$0xf]
    %v306 = vld [vmem:[#allocation2 + $0x10] sm:$0xf]
    %v307 = vld [vmem:[#allocation2 + $0x14] sm:$0xf]
    %v308 = vld [vmem:[#allocation2 + $0x18] sm:$0xf]
    %v309 = vld [vmem:[#allocation2 + $0x1c] sm:$0xf]
    %v310 = vld [vmem:[#allocation2 + $0x20] sm:$0xf]
    %v311 = vld [vmem:[#allocation2 + $0x24] sm:$0xf]
    %v312 = vld [vmem:[#allocation2 + $0x28] sm:$0xf]
    %v313 = vld [vmem:[#allocation2 + $0x2c] sm:$0xf]
    %v314 = vld [vmem:[#allocation2 + $0x30] sm:$0xf]
    %v315 = vld [vmem:[#allocation2 + $0x34] sm:$0xf]
    %v316 = vld [vmem:[#allocation2 + $0x38] sm:$0xf]
    %v317 = vld [vmem:[#allocation2 + $0x3c] sm:$0xf]
    %v318 = vld [vmem:[#allocation2 + $0x40] sm:$0xf]
    %v319 = vld [vmem:[#allocation2 + $0x44] sm:$0xf]
    %v320 = vld [vmem:[#allocation2 + $0x48] sm:$0xf]
    %v321 = vld [vmem:[#allocation2 + $0x4c] sm:$0xf]
    %v322 = vld [vmem:[#allocation2 + $0x50] sm:$0xf]
    %v323 = vld [vmem:[#allocation2 + $0x54] sm:$0xf]
    %v324 = vld [vmem:[#allocation2 + $0x58] sm:$0xf]
    %v325 = vld [vmem:[#allocation2 + $0x5c] sm:$0xf]
    %v326 = vld [vmem:[#allocation2 + $0x60] sm:$0xf]
    %v327 = vld [vmem:[#allocation2 + $0x64] sm:$0xf]
    %v328 = vld [vmem:[#allocation2 + $0x68] sm:$0xf]
    %v329 = vld [vmem:[#allocation2 + $0x6c] sm:$0xf]
    %v330 = vld [vmem:[#allocation2 + $0x70] sm:$0xf]
    %v331 = vld [vmem:[#allocation2 + $0x74] sm:$0xf]
    %v332 = vld [vmem:[#allocation2 + $0x78] sm:$0xf]
    %v333 = vld [vmem:[#allocation2 + $0x7c] sm:$0xf]
    %v334 = vld [vmem:[#allocation2 + $0x80] sm:$0xf]
    %v335 = vld [vmem:[#allocation2 + $0x84] sm:$0xf]
    %v336 = vld [vmem:[#allocation2 + $0x88] sm:$0xf]
    %v337 = vld [vmem:[#allocation2 + $0x8c] sm:$0xf]
    %v338 = vld [vmem:[#allocation2 + $0x90] sm:$0xf]
    %v339 = vld [vmem:[#allocation2 + $0x94] sm:$0xf]
    %v340 = vld [vmem:[#allocation2 + $0x98] sm:$0xf]
    %v341 = vld [vmem:[#allocation2 + $0x9c] sm:$0xf]
    %v342 = vld [vmem:[#allocation2 + $0xa0] sm:$0xf]
    %v343 = vld [vmem:[#allocation2 + $0xa4] sm:$0xf]
    %v344 = vld [vmem:[#allocation2 + $0xa8] sm:$0xf]
    %v345 = vld [vmem:[#allocation2 + $0xac] sm:$0xf]
    %v346 = vld [vmem:[#allocation2 + $0xb0] sm:$0xf]
    %v347 = vld [vmem:[#allocation2 + $0xb4] sm:$0xf]
    %v348 = vld [vmem:[#allocation2 + $0xb8] sm:$0xf]
    %v349 = vld [vmem:[#allocation2 + $0xbc] sm:$0xf]
    %v350 = vld [vmem:[#allocation2 + $0xc0] sm:$0xf]
    %v351 = vld [vmem:[#allocation2 + $0xc4] sm:$0xf]
    %v352 = vld [vmem:[#allocation2 + $0xc8] sm:$0xf]
    %v353 = vld [vmem:[#allocation2 + $0xcc] sm:$0xf]
    %v354 = vld [vmem:[#allocation2 + $0xd0] sm:$0xf]
    %v355 = vld [vmem:[#allocation2 + $0xd4] sm:$0xf]
    %v356 = vld [vmem:[#allocation2 + $0xd8] sm:$0xf]
    %v357 = vld [vmem:[#allocation2 + $0xdc] sm:$0xf]
    %v358 = vld [vmem:[#allocation2 + $0xe0] sm:$0xf]
    %v359 = vld [vmem:[#allocation2 + $0xe4] sm:$0xf]
    %v360 = vld [vmem:[#allocation2 + $0xe8] sm:$0xf]
    %v361 = vld [vmem:[#allocation2 + $0xec] sm:$0xf]
    %v362 = vld [vmem:[#allocation2 + $0xf0] sm:$0xf]
    %v363 = vld [vmem:[#allocation2 + $0xf4] sm:$0xf]
    %v364 = vld [vmem:[#allocation2 + $0xf8] sm:$0xf]
    %v365 = vld [vmem:[#allocation2 + $0xfc] sm:$0xf]
    %v366 = vld [vmem:[%s4] sm:$0x1]
    %v368 = vlaneseq
    %v369 = vshrl.u32 %v368, 7
    %v370 = vsub.s32 0, %v369
    %v371 = vrot.slane %v366, %v370
    %v437 = vunpack.c.l.b16 %v302
    %v438 = vunpack.c.l.b16 %v303
    %v439 = vunpack.c.l.b16 %v304
    %v440 = vunpack.c.l.b16 %v305
    %v441 = vunpack.c.l.b16 %v306
    %v442 = vunpack.c.l.b16 %v307
    %v443 = vunpack.c.l.b16 %v308
    %v444 = vunpack.c.l.b16 %v309
    %v445 = vunpack.c.l.b16 %v310
    %v446 = vunpack.c.l.b16 %v311
    %v447 = vunpack.c.l.b16 %v312
    %v448 = vunpack.c.l.b16 %v313
    %v449 = vunpack.c.l.b16 %v314
    %v450 = vunpack.c.l.b16 %v315
    %v451 = vunpack.c.l.b16 %v316
    %v452 = vunpack.c.l.b16 %v317
    %v453 = vunpack.c.l.b16 %v318
    %v454 = vunpack.c.l.b16 %v319
    %v455 = vunpack.c.l.b16 %v320
    %v456 = vunpack.c.l.b16 %v321
    %v457 = vunpack.c.l.b16 %v322
    %v458 = vunpack.c.l.b16 %v323
    %v459 = vunpack.c.l.b16 %v324
    %v460 = vunpack.c.l.b16 %v325
    %v461 = vunpack.c.l.b16 %v326
    %v462 = vunpack.c.l.b16 %v327
    %v463 = vunpack.c.l.b16 %v328
    %v464 = vunpack.c.l.b16 %v329
    %v465 = vunpack.c.l.b16 %v330
    %v466 = vunpack.c.l.b16 %v331
    %v467 = vunpack.c.l.b16 %v332
    %v468 = vunpack.c.l.b16 %v333
    %v469 = vunpack.c.l.b16 %v334
    %v470 = vunpack.c.l.b16 %v335
    %v471 = vunpack.c.l.b16 %v336
    %v472 = vunpack.c.l.b16 %v337
    %v473 = vunpack.c.l.b16 %v338
    %v474 = vunpack.c.l.b16 %v339
    %v475 = vunpack.c.l.b16 %v340
    %v476 = vunpack.c.l.b16 %v341
    %v477 = vunpack.c.l.b16 %v342
    %v478 = vunpack.c.l.b16 %v343
    %v479 = vunpack.c.l.b16 %v344
    %v480 = vunpack.c.l.b16 %v345
    %v481 = vunpack.c.l.b16 %v346
    %v482 = vunpack.c.l.b16 %v347
    %v483 = vunpack.c.l.b16 %v348
    %v484 = vunpack.c.l.b16 %v349
    %v485 = vunpack.c.l.b16 %v350
    %v486 = vunpack.c.l.b16 %v351
    %v487 = vunpack.c.l.b16 %v352
    %v488 = vunpack.c.l.b16 %v353
    %v489 = vunpack.c.l.b16 %v354
    %v490 = vunpack.c.l.b16 %v355
    %v491 = vunpack.c.l.b16 %v356
    %v492 = vunpack.c.l.b16 %v357
    %v493 = vunpack.c.l.b16 %v358
    %v494 = vunpack.c.l.b16 %v359
    %v495 = vunpack.c.l.b16 %v360
    %v496 = vunpack.c.l.b16 %v361
    %v497 = vunpack.c.l.b16 %v362
    %v498 = vunpack.c.l.b16 %v363
    %v499 = vunpack.c.l.b16 %v364
    %v500 = vunpack.c.l.b16 %v365
    %v501 = vpack.c.b16 %v438, %v437
    %v502 = vpack.c.b16 %v440, %v439
    %v503 = vpack.c.b16 %v442, %v441
    %v504 = vpack.c.b16 %v444, %v443
    %v505 = vpack.c.b16 %v446, %v445
    %v506 = vpack.c.b16 %v448, %v447
    %v507 = vpack.c.b16 %v450, %v449
    %v508 = vpack.c.b16 %v452, %v451
    %v509 = vpack.c.b16 %v454, %v453
    %v510 = vpack.c.b16 %v456, %v455
    %v511 = vpack.c.b16 %v458, %v457
    %v512 = vpack.c.b16 %v460, %v459
    %v513 = vpack.c.b16 %v462, %v461
    %v514 = vpack.c.b16 %v464, %v463
    %v515 = vpack.c.b16 %v466, %v465
    %v516 = vpack.c.b16 %v468, %v467
    %v517 = vpack.c.b16 %v470, %v469
    %v518 = vpack.c.b16 %v472, %v471
    %v519 = vpack.c.b16 %v474, %v473
    %v520 = vpack.c.b16 %v476, %v475
    %v521 = vpack.c.b16 %v478, %v477
    %v522 = vpack.c.b16 %v480, %v479
    %v523 = vpack.c.b16 %v482, %v481
    %v524 = vpack.c.b16 %v484, %v483
    %v525 = vpack.c.b16 %v486, %v485
    %v526 = vpack.c.b16 %v488, %v487
    %v527 = vpack.c.b16 %v490, %v489
    %v528 = vpack.c.b16 %v492, %v491
    %v529 = vpack.c.b16 %v494, %v493
    %v530 = vpack.c.b16 %v496, %v495
    %v531 = vpack.c.b16 %v498, %v497
    %v532 = vpack.c.b16 %v500, %v499
    %565 = vmatprep.subr.bf16.mxu0 0
    %566 = vmatpush1.bf16.msra.mxu0 %v508
    %567 = vmatprep.subr.bf16.mxu0 0
    %568 = vmatpush1.bf16.msra.mxu0 %v507
    %569 = vmatprep.subr.bf16.mxu0 0
    %570 = vmatpush1.bf16.msra.mxu0 %v506
    %571 = vmatprep.subr.bf16.mxu0 0
    %572 = vmatpush1.bf16.msra.mxu0 %v505
    %573 = vmatprep.subr.bf16.mxu0 0
    %574 = vmatpush1.bf16.msra.mxu0 %v504
    %575 = vmatprep.subr.bf16.mxu0 0
    %576 = vmatpush1.bf16.msra.mxu0 %v503
    %577 = vmatprep.subr.bf16.mxu0 0
    %578 = vmatpush1.bf16.msra.mxu0 %v502
    %579 = vmatprep.subr.bf16.mxu0 0
    %580 = vmatpush1.bf16.msra.mxu0 %v501
    %581 = vmatprep.subr.bf16.mxu0 0
    %582 = vmatpush2.bf16.msra.mxu0 %v516
    %583 = vmatprep.subr.bf16.mxu0 0
    %584 = vmatpush2.bf16.msra.mxu0 %v515
    %585 = vmatprep.subr.bf16.mxu0 0
    %586 = vmatpush2.bf16.msra.mxu0 %v514
    %587 = vmatprep.subr.bf16.mxu0 0
    %588 = vmatpush2.bf16.msra.mxu0 %v513
    %589 = vmatprep.subr.bf16.mxu0 0
    %590 = vmatpush2.bf16.msra.mxu0 %v512
    %591 = vmatprep.subr.bf16.mxu0 0
    %592 = vmatpush2.bf16.msra.mxu0 %v511
    %593 = vmatprep.subr.bf16.mxu0 0
    %594 = vmatpush2.bf16.msra.mxu0 %v510
    %595 = vmatprep.subr.bf16.mxu0 0
    %596 = vmatpush2.bf16.msra.mxu0 %v509
    %597 = vmatprep.mubr.bf16.mxu0 %v287
    %598 = vmatmul.mubr.bf16.gmra.mxu0 %v286
    %v599 = vpop.f32.mrf.mxu0
    %v600 = vadd.f32 %v371, %v599
    %v601 = vpop.f32.mrf.mxu0
    %v602 = vpop.f32.mrf.mxu0
    %v603 = vadd.f32 %v371, %v602
    %v604 = vpop.f32.mrf.mxu0
    %605 = vmatprep.mubr.bf16.mxu0 %v291
    %606 = vmatmul.mubr.bf16.gmra.mxu0 %v290
    %v607 = vpop.f32.mrf.mxu0
    %v608 = vadd.f32 %v371, %v607
    %v609 = vpop.f32.mrf.mxu0
    %v610 = vpop.f32.mrf.mxu0
    %v611 = vadd.f32 %v371, %v610
    %v612 = vpop.f32.mrf.mxu0
    %613 = vmatprep.mubr.bf16.mxu0 %v295
    %614 = vmatmul.mubr.bf16.gmra.mxu0 %v294
    %v615 = vpop.f32.mrf.mxu0
    %v616 = vadd.f32 %v371, %v615
    %v617 = vpop.f32.mrf.mxu0
    %v618 = vpop.f32.mrf.mxu0
    %v619 = vadd.f32 %v371, %v618
    %v620 = vpop.f32.mrf.mxu0
    %621 = vmatprep.mubr.bf16.mxu0 %v299
    %622 = vmatmul.mubr.bf16.gmra.mxu0 %v298
    %v623 = vpop.f32.mrf.mxu0
    %v624 = vadd.f32 %v371, %v623
    %v625 = vpop.f32.mrf.mxu0
    %v626 = vpop.f32.mrf.mxu0
    %v627 = vadd.f32 %v371, %v626
    %v628 = vpop.f32.mrf.mxu0
    %629 = vdwg.mxu0
    %630 = vmatprep.subr.bf16.mxu0 0
    %631 = vmatpush1.bf16.msra.mxu0 %v524
    %632 = vmatprep.subr.bf16.mxu0 0
    %633 = vmatpush1.bf16.msra.mxu0 %v523
    %634 = vmatprep.subr.bf16.mxu0 0
    %635 = vmatpush1.bf16.msra.mxu0 %v522
    %636 = vmatprep.subr.bf16.mxu0 0
    %637 = vmatpush1.bf16.msra.mxu0 %v521
    %638 = vmatprep.subr.bf16.mxu0 0
    %639 = vmatpush1.bf16.msra.mxu0 %v520
    %640 = vmatprep.subr.bf16.mxu0 0
    %641 = vmatpush1.bf16.msra.mxu0 %v519
    %642 = vmatprep.subr.bf16.mxu0 0
    %643 = vmatpush1.bf16.msra.mxu0 %v518
    %644 = vmatprep.subr.bf16.mxu0 0
    %645 = vmatpush1.bf16.msra.mxu0 %v517
    %646 = vmatprep.subr.bf16.mxu0 0
    %647 = vmatpush2.bf16.msra.mxu0 %v532
    %648 = vmatprep.subr.bf16.mxu0 0
    %649 = vmatpush2.bf16.msra.mxu0 %v531
    %650 = vmatprep.subr.bf16.mxu0 0
    %651 = vmatpush2.bf16.msra.mxu0 %v530
    %652 = vmatprep.subr.bf16.mxu0 0
    %653 = vmatpush2.bf16.msra.mxu0 %v529
    %654 = vmatprep.subr.bf16.mxu0 0
    %655 = vmatpush2.bf16.msra.mxu0 %v528
    %656 = vmatprep.subr.bf16.mxu0 0
    %657 = vmatpush2.bf16.msra.mxu0 %v527
    %658 = vmatprep.subr.bf16.mxu0 0
    %659 = vmatpush2.bf16.msra.mxu0 %v526
    %660 = vmatprep.subr.bf16.mxu0 0
    %661 = vmatpush2.bf16.msra.mxu0 %v525
    %662 = vmatprep.mubr.bf16.mxu0 %v289
    %663 = vmatmul.mubr.bf16.gmra.mxu0 %v288
    %v664 = vpop.f32.mrf.mxu0
    %v665 = vadd.f32 %v600, %v664
    %v666 = vpop.f32.mrf.mxu0
    %v667 = vpop.f32.mrf.mxu0
    %v668 = vadd.f32 %v603, %v667
    %v669 = vpop.f32.mrf.mxu0
    %670 = vmatprep.mubr.bf16.mxu0 %v293
    %671 = vmatmul.mubr.bf16.gmra.mxu0 %v292
    %v672 = vpop.f32.mrf.mxu0
    %v673 = vadd.f32 %v608, %v672
    %v674 = vpop.f32.mrf.mxu0
    %v675 = vpop.f32.mrf.mxu0
    %v676 = vadd.f32 %v611, %v675
    %v677 = vpop.f32.mrf.mxu0
    %678 = vmatprep.mubr.bf16.mxu0 %v297
    %679 = vmatmul.mubr.bf16.gmra.mxu0 %v296
    %v680 = vpop.f32.mrf.mxu0
    %v681 = vadd.f32 %v616, %v680
    %v682 = vpop.f32.mrf.mxu0
    %v683 = vpop.f32.mrf.mxu0
    %v684 = vadd.f32 %v619, %v683
    %v685 = vpop.f32.mrf.mxu0
    %686 = vmatprep.mubr.bf16.mxu0 %v301
    %687 = vmatmul.mubr.bf16.gmra.mxu0 %v300
    %v688 = vpop.f32.mrf.mxu0
    %v689 = vadd.f32 %v624, %v688
    %v690 = vpop.f32.mrf.mxu0
    %v691 = vpop.f32.mrf.mxu0
    %v692 = vadd.f32 %v627, %v691
    %v693 = vpop.f32.mrf.mxu0
    %694 = vdwg.mxu0
    %695 = vmax.xlane.f32.xlu0 %v665
    %v696 = vpop.xlane.xlu0 %695
    %697 = vmax.xlane.f32.xlu0 %v668
    %v698 = vpop.xlane.xlu0 %697
    %699 = vmax.xlane.f32.xlu0 %v673
    %v700 = vpop.xlane.xlu0 %699
    %701 = vmax.xlane.f32.xlu0 %v676
    %v702 = vpop.xlane.xlu0 %701
    %703 = vmax.xlane.f32.xlu0 %v681
    %v704 = vpop.xlane.xlu0 %703
    %705 = vmax.xlane.f32.xlu0 %v684
    %v706 = vpop.xlane.xlu0 %705
    %707 = vmax.xlane.f32.xlu0 %v689
    %v708 = vpop.xlane.xlu0 %707
    %709 = vmax.xlane.f32.xlu0 %v692
    %v710 = vpop.xlane.xlu0 %709
    %v711 = vsub.f32 %v665, %v696
    %v712 = vsub.f32 %v668, %v698
    %v713 = vsub.f32 %v673, %v700
    %v714 = vsub.f32 %v676, %v702
    %v715 = vsub.f32 %v681, %v704
    %v716 = vsub.f32 %v684, %v706
    %v717 = vsub.f32 %v689, %v708
    %v718 = vsub.f32 %v692, %v710
    %v719 = vmul.f32 %v711, 1.442695
    %v720 = vpow.pop %v719
    %v721 = vmul.f32 %v712, 1.442695
    %v722 = vpow.pop %v721
    %v723 = vmul.f32 %v713, 1.442695
    %v724 = vpow.pop %v723
    %v725 = vmul.f32 %v714, 1.442695
    %v726 = vpow.pop %v725
    %v727 = vmul.f32 %v715, 1.442695
    %v728 = vpow.pop %v727
    %v729 = vmul.f32 %v716, 1.442695
    %v730 = vpow.pop %v729
    %v731 = vmul.f32 %v717, 1.442695
    %v732 = vpow.pop %v731
    %v733 = vmul.f32 %v718, 1.442695
    %v734 = vpow.pop %v733
    %735 = vadd.xlane.f32.xlu0 %v720
    %v736 = vpop.xlane.xlu0 %735
    %737 = vadd.xlane.f32.xlu0 %v722
    %v738 = vpop.xlane.xlu0 %737
    %739 = vadd.xlane.f32.xlu0 %v724
    %v740 = vpop.xlane.xlu0 %739
    %741 = vadd.xlane.f32.xlu0 %v726
    %v742 = vpop.xlane.xlu0 %741
    %743 = vadd.xlane.f32.xlu0 %v728
    %v744 = vpop.xlane.xlu0 %743
    %745 = vadd.xlane.f32.xlu0 %v730
    %v746 = vpop.xlane.xlu0 %745
    %747 = vadd.xlane.f32.xlu0 %v732
    %v748 = vpop.xlane.xlu0 %747
    %749 = vadd.xlane.f32.xlu0 %v734
    %v750 = vpop.xlane.xlu0 %749
    %v751 = vrcp.pop %v736
    %v752 = vmul.f32 %v720, %v751
    %v753 = vrcp.pop %v738
    %v754 = vmul.f32 %v722, %v753
    %v755 = vrcp.pop %v740
    %v756 = vmul.f32 %v724, %v755
    %v757 = vrcp.pop %v742
    %v758 = vmul.f32 %v726, %v757
    %v759 = vrcp.pop %v744
    %v760 = vmul.f32 %v728, %v759
    %v761 = vrcp.pop %v746
    %v762 = vmul.f32 %v730, %v761
    %v763 = vrcp.pop %v748
    %v764 = vmul.f32 %v732, %v763
    %v765 = vrcp.pop %v750
    %v766 = vmul.f32 %v734, %v765
    %767 = vst [vmem:[#allocation5] sm:$0xff] %v752
    %768 = vst [vmem:[#allocation5 + $0x8] sm:$0xff] %v754
    %769 = vst [vmem:[#allocation5 + $0x10] sm:$0xff] %v756
    %770 = vst [vmem:[#allocation5 + $0x18] sm:$0xff] %v758
    %771 = vst [vmem:[#allocation5 + $0x20] sm:$0xff] %v760
    %772 = vst [vmem:[#allocation5 + $0x28] sm:$0xff] %v762
    %773 = vst [vmem:[#allocation5 + $0x30] sm:$0xff] %v764
    %774 = vst [vmem:[#allocation5 + $0x38] sm:$0xff] %v766
    // Predicated region
    $region26: #{tpu_custom_call.1} parent=1 // pred_check
      _
    $region27: #{tpu_custom_call.1} parent=1 // pred_check_branch
      %776 = sbr.rel (0) target = $region29
    $region28: #{tpu_custom_call.1} parent=1 // pred_region
      %s778 = ssub.s32 1024, 1024
      %779 = vsyncadd [#allocation4], %s778
      %s780 = sshll.u32 [#allocation5], 4
      %s781 = int_to_ptr.vmem [resolvable:$true] %s780
      %786 = dma.vmem_to_hbm [thread:$0]  %s781, 1024, %s5, [#allocation4], 128, 128, 8
    $region29: #{tpu_custom_call.1} parent=1 // pred_fallthru
      _
    // Predicated region
    $region30: #{tpu_custom_call.1} parent=1 // pred_check
      _
    $region31: #{tpu_custom_call.1} parent=1 // pred_check_branch
      %788 = sbr.rel (0) target = $region33
    $region32: #{tpu_custom_call.1} parent=1 // pred_region
      %789 = dma.done [#allocation4], 1024
    $region33: #{tpu_custom_call.1} parent=1 // pred_fallthru
      _
    %790 = vsyncpa [#allocation3], 1
    %791 = vsyncpa [#allocation4], 1

</llo_original>
